<compile_context>
chip_gen: v7x
topology: tpu7x:2x2x1
jax: 0.10.0
libtpu: 0.0.40
codegen_flags: <defaults>
</compile_context>

<pallas_src>
import math

import jax
import jax.numpy as jnp
from jax.experimental import pallas as pl
from jax.experimental.pallas import tpu as pltpu


def _copy_kernel(w_ref, o_ref):
    # Identity forward: out = weight (elementwise copy of the current tile).
    o_ref[...] = w_ref[...]


_LANE = 128
_SUBLANE = 8
# Cap per-tile elements so 2(in)+2(out) double-buffered tiles stay tiny on every
# generation: 512K f32 elements = 2 MiB/tile -> ~8 MiB total VMEM.
_MAX_TILE_ELEMS = 512 * 1024


def _flat_layout(total):
    """Pick a lane-dense (rows, cols) view and a (block_rows, cols) tile."""
    rows, cols = 1, total
    # Prefer an (8,128)-aligned factorization with the widest lane extent (<=4096).
    for m in range(32, 0, -1):
        c = _LANE * m
        if total % c == 0 and (total // c) % _SUBLANE == 0:
            rows, cols = total // c, c
            break
    else:
        # Lane-aligned but sublane-ragged (rows in 1..7): still a valid full-extent
        # block and the data is tiny in that case.
        for m in range(32, 0, -1):
            c = _LANE * m
            if total % c == 0:
                rows, cols = total // c, c
                break
        # else: odd total not divisible by 128 -> single (1, total) full-extent
        # block; fine for small/odd parameter sizes.

    block_rows = rows
    if rows * cols > _MAX_TILE_ELEMS and rows % _SUBLANE == 0:
        # Tile the sublane axis in multiples of 8 that divide `rows`.
        target = max(_SUBLANE, _MAX_TILE_ELEMS // cols)
        br = (target // _SUBLANE) * _SUBLANE
        while br > _SUBLANE and rows % br != 0:
            br -= _SUBLANE
        if rows % br == 0:
            block_rows = br
    return rows, cols, block_rows


def synthesized_image_forward(weight, *, materialize=True):
    """Forward pass of SynthesizedImage.

    materialize=False returns the parameter directly (zero-cost, exactly matches
    the PyTorch forward).  materialize=True runs the Pallas copy kernel with
    input/output aliasing and lane-dense tiling.
    """
    if not materialize:
        return weight

    shape = weight.shape
    total = math.prod(shape) if shape else 1
    rows, cols, block_rows = _flat_layout(total)
    flat = weight.reshape(rows, cols)

    grid = (rows // block_rows,)

    out_flat = pl.pallas_call(
        _copy_kernel,
        out_shape=jax.ShapeDtypeStruct((rows, cols), weight.dtype),
        grid=grid,
        in_specs=[pl.BlockSpec((block_rows, cols), lambda i: (i, 0))],
        out_specs=pl.BlockSpec((block_rows, cols), lambda i: (i, 0)),
        # Output aliases the input buffer: no second HBM allocation / round-trip
        # when XLA can donate; matches "return the parameter itself" semantics.
        input_output_aliases={0: 0},
        compiler_params=pltpu.CompilerParams(
            dimension_semantics=("parallel",),
        ),
    )(flat)

    return out_flat.reshape(shape)


class SynthesizedImage:
    """JAX/Pallas port of the PyTorch SynthesizedImage module."""

    def __init__(self, img_shape, key):
        # torch.rand(*img_shape) -> uniform [0, 1) float32, deterministic here.
        self.weight = jax.random.uniform(key, img_shape, dtype=jnp.float32)

    def __call__(self, materialize=True):
        return synthesized_image_forward(self.weight, materialize=materialize)


if __name__ == "__main__":
    key = jax.random.PRNGKey(0)
    img_shape = (2, 4, 16, 16)  # small N, C, H, W

    model = SynthesizedImage(img_shape, key)
    # Snapshot the expected value before invoking the aliased kernel (defensive
    # w.r.t. buffer donation of the aliased input).
    expected = jnp.array(model.weight, copy=True)

    out = model()  # runs the Pallas kernel path
    out = jax.block_until_ready(out)

    assert out.shape == img_shape
    assert out.dtype == jnp.float32
    assert bool(jnp.array_equal(out, expected))

    print("KERNEL_OK")
</pallas_src>

<mosaic_0001>
module attributes {stable_mosaic.version = 11 : i64} {
  func.func @_copy_kernel(%arg0: i32, %arg1: memref<8x256xf32, #tpu.memory_space<vmem>>, %arg2: memref<8x256xf32, #tpu.memory_space<vmem>>) attributes {dimension_semantics = [#tpu.dimension_semantics<parallel>], iteration_bounds = array<i64: 1>, scalar_prefetch = 0 : i64, scratch_operands = 0 : i64, tpu.core_type = #tpu.core_type<tc>, window_params = [{transform_indices = @transform_0, window_bounds = array<i64: 8, 256>}, {transform_indices = @transform_1, window_bounds = array<i64: 8, 256>}]} {
    %c0 = arith.constant 0 : index
    %c0_0 = arith.constant 0 : index
    %0 = vector.load %arg1[%c0, %c0_0] : memref<8x256xf32, #tpu.memory_space<vmem>>, vector<8x256xf32>
    %c0_1 = arith.constant 0 : index
    %c0_2 = arith.constant 0 : index
    %1 = vector.load %arg2[%c0_1, %c0_2] : memref<8x256xf32, #tpu.memory_space<vmem>>, vector<8x256xf32>
    tpu.vector_store %arg2[%c0_1, %c0_2], %0 {strides = array<i32>} : memref<8x256xf32, #tpu.memory_space<vmem>>, vector<8x256xf32>,
    return
  }
  func.func @transform_0(%arg0: i32) -> (i32, i32) {
    %c0_i32 = arith.constant 0 : i32
    %c0_i32_0 = arith.constant 0 : i32
    return %arg0, %c0_i32 : i32, i32
  }
  func.func @transform_1(%arg0: i32) -> (i32, i32) {
    %c0_i32 = arith.constant 0 : i32
    %c0_i32_0 = arith.constant 0 : i32
    return %arg0, %c0_i32 : i32, i32
  }
}

</mosaic_0001>

<llo_original>
// kernel: tpu_custom_call.1
$region0: #{tpu_custom_call.1}
  #allocation0 [shape = 'u32[]', space=smem, size = 0x4, offset = 0x4, fixed_abs, tag = 'smem constant byte address 0x4 - core index']
  #allocation1 [shape = 'u32[144,128]{1,0:T(1,128)}', space=vmem, size = 0x12000, scoped, tag = 'internal scratch']
  %s0 = inlined_call_operand.hbm [shape: f32[8,256], index: 0, kind: input, shape index: {}, may-alias: {0,1}]
  %s1 = inlined_call_operand.hbm [shape: f32[8,256], index: 1, kind: output, shape index: {}, may-alias: {0,1}]
  %s2 = sld [smem:[#allocation0]]
  $region18: #{tpu_custom_call.1} parent=0
    _
  %s4 = ssub.s32 1, %s2
  %s5 = scalar_select 0, %s4, %s2
  $region1: #{tpu_custom_call.1} parent=0
    #allocation2 [shape = 'u8[8192]{0}', space=vmem, size = 0x2000, scoped, tag = 'input window, operand 0, single buffered']
    #allocation3 [shape = 's32[1]{0}', space=sflag, size = 0x4, scoped, tag = 'scoped memory for tpu_custom_call.1']
    #allocation4 [shape = 's32[1]{0}', space=sflag, size = 0x4, scoped, tag = 'scoped memory for tpu_custom_call.1']
    #allocation5 [shape = 'u8[8192]{0}', space=vmem, size = 0x2000, scoped, tag = 'output window, operand 0, single buffered']
    %6 = vsyncpa [#allocation3], 0
    %7 = vsyncpa [#allocation4], 0
    // Predicated region
    $region2: #{tpu_custom_call.1} parent=1 // pred_check
      _
    $region3: #{tpu_custom_call.1} parent=1 // pred_check_branch
      %9 = sbr.rel (0) target = $region5
    $region4: #{tpu_custom_call.1} parent=1 // pred_region
      %s11 = ssub.s32 256, 256
      %12 = vsyncadd [#allocation3], %s11
      %s14 = sshll.u32 [#allocation2], 4
      %s15 = int_to_ptr.vmem [resolvable:$true] %s14
      %17 = dma.hbm_to_vmem [thread:$0]  %s0, 256, %s15, [#allocation3]
    $region5: #{tpu_custom_call.1} parent=1 // pred_fallthru
      _
    // Predicated region
    $region6: #{tpu_custom_call.1} parent=1 // pred_check
      _
    $region7: #{tpu_custom_call.1} parent=1 // pred_check_branch
      %19 = sbr.rel (0) target = $region9
    $region8: #{tpu_custom_call.1} parent=1 // pred_region
      %20 = dma.done [#allocation3], 256
    $region9: #{tpu_custom_call.1} parent=1 // pred_fallthru
      _
    %v21 = vld [vmem:[#allocation2] sm:$0xff]
    %v22 = vld [vmem:[#allocation2 + $0x8] sm:$0xff]
    %23 = vst [vmem:[#allocation5] sm:$0xff] %v21
    %24 = vst [vmem:[#allocation5 + $0x8] sm:$0xff] %v22
    // Predicated region
    $region10: #{tpu_custom_call.1} parent=1 // pred_check
      _
    $region11: #{tpu_custom_call.1} parent=1 // pred_check_branch
      %26 = sbr.rel (0) target = $region13
    $region12: #{tpu_custom_call.1} parent=1 // pred_region
      %s28 = ssub.s32 256, 256
      %29 = vsyncadd [#allocation4], %s28
      %s31 = sshll.u32 [#allocation5], 4
      %s32 = int_to_ptr.vmem [resolvable:$true] %s31
      %34 = dma.vmem_to_hbm [thread:$0]  %s32, 256, %s1, [#allocation4]
    $region13: #{tpu_custom_call.1} parent=1 // pred_fallthru
      _
    // Predicated region
    $region14: #{tpu_custom_call.1} parent=1 // pred_check
      _
    $region15: #{tpu_custom_call.1} parent=1 // pred_check_branch
      %36 = sbr.rel (0) target = $region17
    $region16: #{tpu_custom_call.1} parent=1 // pred_region
      %37 = dma.done [#allocation4], 256
    $region17: #{tpu_custom_call.1} parent=1 // pred_fallthru
      _
    %38 = vsyncpa [#allocation3], 1
    %39 = vsyncpa [#allocation4], 1

</llo_original>
